<compile_context>
chip_gen: v5e
topology: v5e:2x2
jax: 0.10.0
libtpu: 0.0.40
codegen_flags: <defaults>
</compile_context>

<pallas_src>
import functools

import jax
import jax.numpy as jnp
from jax.experimental import pallas as pl
from jax.experimental.pallas import tpu as pltpu


# --------------------------------------------------------------------------
# Device-dependent sizing
# --------------------------------------------------------------------------
def _round_up(x, m):
    return (x + m - 1) // m * m


def _vmem_params():
    """Return (vmem_limit_bytes, per-block byte target) for the local TPU."""
    mib = 1024 * 1024
    try:
        kind = jax.devices()[0].device_kind.lower()
    except Exception:
        kind = ""
    if "v5 lite" in kind or "v5e" in kind or "v5litepod" in kind:
        return 32 * mib, 2 * mib     # v5e: ~0.8 TB/s, step overhead already <10%
    if "v6" in kind or "trillium" in kind:
        return 64 * mib, 4 * mib     # v6e: 128 MiB physical VMEM, plenty of headroom
    if "v7" in kind:
        return 48 * mib, 5 * mib     # v7x: 64 MiB physical VMEM, 3.2 TB/s HBM
    return 48 * mib, 4 * mib         # unknown: safe under 64 MiB physical VMEM


def _pick_c_blk(N, C, L, itemsize, target, budget):
    """Channel-tile width (granule multiple), or None if single-pass won't fit."""
    gran = 16 if itemsize == 2 else 8
    per_c = N * L * itemsize                    # one channel of x, native dtype
    # Per grid step: 2 input + 2 output pipeline buffers + ~1 f32 temp allowance.
    per_c_step = 4 * per_c + N * L * 4
    fit_budget = (budget * 3 // 4) // max(per_c_step, 1)

    if C <= gran:
        # Full-C block is the only legal sublane tiling here.
        return C if fit_budget >= C else None

    c_by_target = max(target // max(per_c, 1), 1)
    c_blk = min(fit_budget, max(c_by_target, gran), C)   # target advisory, budget hard
    c_blk = (c_blk // gran) * gran
    if c_blk < gran:
        return None                                      # go two-phase

    # Keep >= 2 channel tiles so ("parallel",) can shard across both v7x TCs
    # (measured neutral on single-TC v5e/v6e).
    if c_blk >= C:
        c_blk = _round_up(-(-C // 2), gran)              # round_up(ceil(C/2), gran) < C
    return c_blk


# --------------------------------------------------------------------------
# Single-pass kernels (whole per-channel reduction inside one block)
# --------------------------------------------------------------------------
def _bn_stats(x, inv_count, eps):
    # One pass: per-channel sum / sum-of-squares with f32 accumulation.
    s = jnp.sum(x, axis=(0, 2), keepdims=True, dtype=jnp.float32)
    ssq = jnp.sum(x * x, axis=(0, 2), keepdims=True, dtype=jnp.float32)
    mean = s * inv_count
    var = ssq * inv_count - mean * mean
    return mean, jax.lax.rsqrt(var + eps)


def _bn_kernel(x_ref, o_ref, *, eps, inv_count):
    # Fast path: identity gain/bias (module default init) -> no param DMAs.
    x = x_ref[...]
    mean, rstd = _bn_stats(x, inv_count, eps)
    o_ref[...] = (x.astype(jnp.float32) * rstd - mean * rstd).astype(o_ref.dtype)


def _bn_affine_kernel(x_ref, g_ref, b_ref, o_ref, *, eps, inv_count):
    x = x_ref[...]
    mean, rstd = _bn_stats(x, inv_count, eps)
    scale = rstd * g_ref[...].astype(jnp.float32)
    shift = mean * scale - b_ref[...].astype(jnp.float32)
    o_ref[...] = (x.astype(jnp.float32) * scale - shift).astype(o_ref.dtype)


def _bn_single_pass(xr, gain, bias, eps, c_blk, budget):
    N, C, L = xr.shape
    itemsize = jnp.dtype(xr.dtype).itemsize
    grid = (pl.cdiv(C, c_blk),)
    inv_count = 1.0 / float(N * L)

    cost = pl.CostEstimate(
        flops=7 * N * C * L,
        transcendentals=C,
        bytes_accessed=2 * N * C * L * itemsize + 8 * C,
    )
    x_spec = pl.BlockSpec((N, c_blk, L), lambda c: (0, c, 0))
    params = pltpu.CompilerParams(
        dimension_semantics=("parallel",),
        vmem_limit_bytes=int(budget),
    )

    if gain is None and bias is None:
        return pl.pallas_call(
            functools.partial(_bn_kernel, eps=float(eps), inv_count=inv_count),
            out_shape=jax.ShapeDtypeStruct((N, C, L), xr.dtype),
            grid=grid,
            in_specs=[x_spec],
            out_specs=x_spec,
            compiler_params=params,
            cost_estimate=cost,
        )(xr)

    g = gain if gain is not None else jnp.ones((C,), jnp.float32)
    b = bias if bias is not None else jnp.zeros((C,), jnp.float32)
    p_spec = pl.BlockSpec((1, c_blk, 1), lambda c: (0, c, 0))
    return pl.pallas_call(
        functools.partial(_bn_affine_kernel, eps=float(eps), inv_count=inv_count),
        out_shape=jax.ShapeDtypeStruct((N, C, L), xr.dtype),
        grid=grid,
        in_specs=[x_spec, p_spec, p_spec],
        out_specs=x_spec,
        compiler_params=params,
        cost_estimate=cost,
    )(xr, g.reshape(1, C, 1), b.reshape(1, C, 1))


# --------------------------------------------------------------------------
# Two-phase fallback (per-channel footprint too large for a resident block)
# --------------------------------------------------------------------------
def _stats_kernel(x_ref, sum_ref, ssq_ref, *, n_blk, l_blk, n_valid, l_valid,
                  mask_n, mask_l):
    n_i = pl.program_id(1)
    l_i = pl.program_id(2)

    @pl.when(jnp.logical_and(n_i == 0, l_i == 0))
    def _init():
        sum_ref[...] = jnp.zeros_like(sum_ref)
        ssq_ref[...] = jnp.zeros_like(ssq_ref)

    xf = x_ref[...].astype(jnp.float32)
    if mask_n or mask_l:
        # Ragged batch / spatial tiles: zero padded elements so they cannot
        # pollute the per-channel sums (channel padding is safe by itself).
        valid = jnp.ones(xf.shape, dtype=jnp.bool_)
        if mask_n:
            rows = jax.lax.broadcasted_iota(jnp.int32, xf.shape, 0) + n_i * n_blk
            valid = valid & (rows < n_valid)
        if mask_l:
            lanes = jax.lax.broadcasted_iota(jnp.int32, xf.shape, 2) + l_i * l_blk
            valid = valid & (lanes < l_valid)
        xf = jnp.where(valid, xf, 0.0)

    sum_ref[...] += jnp.sum(xf, axis=(0, 2), keepdims=True)
    ssq_ref[...] += jnp.sum(xf * xf, axis=(0, 2), keepdims=True)


def _apply_kernel(x_ref, s_ref, t_ref, o_ref):
    o_ref[...] = (x_ref[...].astype(jnp.float32) * s_ref[...]
                  - t_ref[...]).astype(o_ref.dtype)


def _bn_two_phase(xr, gain, bias, eps, budget, target):
    N, C, L = xr.shape
    itemsize = jnp.dtype(xr.dtype).itemsize
    gran = 16 if itemsize == 2 else 8

    c_blk = min(C, gran)
    n_blk = min(N, 8)
    want = max(128, (target // max(n_blk * c_blk * itemsize, 1)) // 128 * 128)
    l_blk = L if want >= L else want

    grid = (pl.cdiv(C, c_blk), pl.cdiv(N, n_blk), pl.cdiv(L, l_blk))
    x_spec = pl.BlockSpec((n_blk, c_blk, l_blk), lambda c, n, l: (n, c, l))
    p_spec = pl.BlockSpec((1, c_blk, 1), lambda c, n, l: (0, c, 0))

    sums, ssqs = pl.pallas_call(
        functools.partial(
            _stats_kernel, n_blk=n_blk, l_blk=l_blk, n_valid=N, l_valid=L,
            mask_n=(N % n_blk != 0), mask_l=(L % l_blk != 0)),
        out_shape=(jax.ShapeDtypeStruct((1, C, 1), jnp.float32),
                   jax.ShapeDtypeStruct((1, C, 1), jnp.float32)),
        grid=grid,
        in_specs=[x_spec],
        out_specs=(p_spec, p_spec),
        compiler_params=pltpu.CompilerParams(
            dimension_semantics=("parallel", "arbitrary", "arbitrary"),
            vmem_limit_bytes=int(budget)),
    )(xr)

    # Tiny per-channel math (length C) kept in plain XLA between the two kernels.
    count = float(N * L)
    mean = sums[0, :, 0] / count
    var = ssqs[0, :, 0] / count - mean * mean
    scale = jax.lax.rsqrt(var + eps)
    if gain is not None:
        scale = scale * gain.astype(jnp.float32)
    shift = mean * scale
    if bias is not None:
        shift = shift - bias.astype(jnp.float32)

    return pl.pallas_call(
        _apply_kernel,
        out_shape=jax.ShapeDtypeStruct((N, C, L), xr.dtype),
        grid=grid,
        in_specs=[x_spec, p_spec, p_spec],
        out_specs=x_spec,
        compiler_params=pltpu.CompilerParams(
            dimension_semantics=("parallel", "parallel", "parallel"),
            vmem_limit_bytes=int(budget)),
    )(xr, scale.reshape(1, C, 1), shift.reshape(1, C, 1))


# --------------------------------------------------------------------------
# Public entry point
# --------------------------------------------------------------------------
def bn_forward(x, gain=None, bias=None, eps=1e-5):
    """BatchNorm2d (training-mode batch stats) forward, NCHW input.

    gain=None / bias=None means the module's default init (ones / zeros) and
    takes the fast path without parameter DMAs.
    """
    N, C, H, W = x.shape
    L = H * W
    xr = x.reshape(N, C, L)                      # zero-copy, lane axis = H*W
    budget, target = _vmem_params()
    itemsize = jnp.dtype(x.dtype).itemsize

    c_blk = _pick_c_blk(N, C, L, itemsize, target, budget)
    if c_blk is None:
        out = _bn_two_phase(xr, gain, bias, eps, budget, target)
    else:
        out = _bn_single_pass(xr, gain, bias, eps, c_blk, budget)
    return out.reshape(N, C, H, W)

    # TODO(synk): running-stat buffer updates (stored_mean/stored_var momentum
    # in F.batch_norm training mode) are module side effects, not part of the
    # returned tensor; they are omitted from the kernel.


def bn_reference(x, gain=None, bias=None, eps=1e-5):
    """Pure-JAX reference of F.batch_norm (training=True) output."""
    xf = x.astype(jnp.float32)
    m = jnp.mean(xf, axis=(0, 2, 3), keepdims=True)
    v = jnp.mean(jnp.square(xf - m), axis=(0, 2, 3), keepdims=True)
    out = (xf - m) * jax.lax.rsqrt(v + eps)
    if gain is not None:
        out = out * gain.reshape(1, -1, 1, 1)
    if bias is not None:
        out = out + bias.reshape(1, -1, 1, 1)
    return out.astype(x.dtype)


if __name__ == "__main__":
    key = jax.random.PRNGKey(0)
    k1, k2, k3 = jax.random.split(key, 3)

    # Case 1: default module init (gain=ones, bias=zeros) -> identity fast path.
    N, C, H, W = 2, 4, 16, 16
    x = jax.random.normal(k1, (N, C, H, W), dtype=jnp.float32)
    out = jax.block_until_ready(bn_forward(x, eps=1e-5))
    ref = bn_reference(x, eps=1e-5)
    assert out.shape == x.shape and out.dtype == x.dtype
    assert jnp.max(jnp.abs(out - ref)) < 1e-4

    # Case 2: explicit (trainable) gain/bias, C=12 -> ragged channel tile path.
    C2 = 12
    x2 = jax.random.normal(k2, (N, C2, H, W), dtype=jnp.float32)
    gain = 1.0 + 0.1 * jax.random.normal(k3, (C2,), dtype=jnp.float32)
    bias = 0.1 * jnp.arange(C2, dtype=jnp.float32)
    out2 = jax.block_until_ready(bn_forward(x2, gain, bias, eps=1e-5))
    ref2 = bn_reference(x2, gain, bias, eps=1e-5)
    assert jnp.max(jnp.abs(out2 - ref2)) < 1e-4

    # Case 3: non-128-multiple spatial size (masked lane stores, no transposes).
    x3 = jax.random.normal(k2, (2, 4, 7, 7), dtype=jnp.float32)
    out3 = jax.block_until_ready(bn_forward(x3, eps=1e-5))
    ref3 = bn_reference(x3, eps=1e-5)
    assert jnp.max(jnp.abs(out3 - ref3)) < 1e-4

    print("KERNEL_OK")
</pallas_src>

<mosaic_0001>
module attributes {stable_mosaic.version = 11 : i64} {
  func.func @_bn_kernel(%arg0: i32, %arg1: memref<2x4x256xf32, #tpu.memory_space<vmem>>, %arg2: memref<2x4x256xf32, #tpu.memory_space<vmem>>) attributes {dimension_semantics = [#tpu.dimension_semantics<parallel>], iteration_bounds = array<i64: 1>, scalar_prefetch = 0 : i64, scratch_operands = 0 : i64, tpu.core_type = #tpu.core_type<tc>, window_params = [{transform_indices = @transform_0, window_bounds = array<i64: 2, 4, 256>}, {transform_indices = @transform_1, window_bounds = array<i64: 2, 4, 256>}]} {
    %c0 = arith.constant 0 : index
    %c0_0 = arith.constant 0 : index
    %c0_1 = arith.constant 0 : index
    %0 = vector.load %arg1[%c0, %c0_0, %c0_1] : memref<2x4x256xf32, #tpu.memory_space<vmem>>, vector<2x4x256xf32>
    %cst = arith.constant dense<0.000000e+00> : vector<4xf32>
    %1 = vector.multi_reduction <add>, %0, %cst [0, 2] : vector<2x4x256xf32> to vector<4xf32>
    %2 = vector.shape_cast %1 : vector<4xf32> to vector<1x4x1xf32>
    %3 = arith.mulf %0, %0 : vector<2x4x256xf32>
    %cst_2 = arith.constant dense<0.000000e+00> : vector<4xf32>
    %4 = vector.multi_reduction <add>, %3, %cst_2 [0, 2] : vector<2x4x256xf32> to vector<4xf32>
    %5 = vector.shape_cast %4 : vector<4xf32> to vector<1x4x1xf32>
    %cst_3 = arith.constant 0.001953125 : f32
    %6 = vector.broadcast %cst_3 : f32 to vector<1x4x1xf32>
    %7 = arith.mulf %2, %6 : vector<1x4x1xf32>
    %cst_4 = arith.constant 0.001953125 : f32
    %8 = vector.broadcast %cst_4 : f32 to vector<1x4x1xf32>
    %9 = arith.mulf %5, %8 : vector<1x4x1xf32>
    %10 = arith.mulf %7, %7 : vector<1x4x1xf32>
    %11 = arith.subf %9, %10 : vector<1x4x1xf32>
    %cst_5 = arith.constant 9.99999974E-6 : f32
    %12 = vector.broadcast %cst_5 : f32 to vector<1x4x1xf32>
    %13 = arith.addf %11, %12 : vector<1x4x1xf32>
    %14 = math.rsqrt %13 : vector<1x4x1xf32>
    %15 = vector.broadcast %14 : vector<1x4x1xf32> to vector<2x4x256xf32>
    %16 = arith.mulf %0, %15 : vector<2x4x256xf32>
    %17 = arith.mulf %7, %14 : vector<1x4x1xf32>
    %18 = vector.broadcast %17 : vector<1x4x1xf32> to vector<2x4x256xf32>
    %19 = arith.subf %16, %18 : vector<2x4x256xf32>
    %c0_6 = arith.constant 0 : index
    %c0_7 = arith.constant 0 : index
    %c0_8 = arith.constant 0 : index
    %20 = vector.load %arg2[%c0_6, %c0_7, %c0_8] : memref<2x4x256xf32, #tpu.memory_space<vmem>>, vector<2x4x256xf32>
    tpu.vector_store %arg2[%c0_6, %c0_7, %c0_8], %19 {strides = array<i32>} : memref<2x4x256xf32, #tpu.memory_space<vmem>>, vector<2x4x256xf32>,
    return
  }
  func.func @transform_0(%arg0: i32) -> (i32, i32, i32) {
    %c0_i32 = arith.constant 0 : i32
    %c0_i32_0 = arith.constant 0 : i32
    %c0_i32_1 = arith.constant 0 : i32
    return %c0_i32, %arg0, %c0_i32_0 : i32, i32, i32
  }
  func.func @transform_1(%arg0: i32) -> (i32, i32, i32) {
    %c0_i32 = arith.constant 0 : i32
    %c0_i32_0 = arith.constant 0 : i32
    %c0_i32_1 = arith.constant 0 : i32
    return %c0_i32, %arg0, %c0_i32_0 : i32, i32, i32
  }
}

</mosaic_0001>

<llo_original>
// kernel: tpu_custom_call.1
$region0: #{tpu_custom_call.1}
  #allocation0 [shape = 'u32[]', space=smem, size = 0x4, offset = 0x4, fixed_abs, tag = 'smem constant byte address 0x4 - core index']
  #allocation1 [shape = 'u32[72,128]{1,0:T(1,128)}', space=vmem, size = 0x9000, scoped, tag = 'internal scratch']
  %s0 = inlined_call_operand.hbm [shape: f32[2,4,256], index: 0, kind: input, shape index: {}]
  %s1 = inlined_call_operand.hbm [shape: f32[2,4,256], index: 1, kind: output, shape index: {}]
  %s2 = sld [smem:[#allocation0]]
  $region18: #{tpu_custom_call.1} parent=0
    _
  %s4 = ssub.s32 1, %s2
  %s5 = scalar_select 0, %s4, %s2
  $region1: #{tpu_custom_call.1} parent=0
    #allocation2 [shape = 'u8[8192]{0}', space=vmem, size = 0x2000, scoped, tag = 'input window, operand 0, single buffered']
    #allocation3 [shape = 's32[1]{0}', space=sflag, size = 0x4, scoped, tag = 'scoped memory for tpu_custom_call.1']
    #allocation4 [shape = 's32[1]{0}', space=sflag, size = 0x4, scoped, tag = 'scoped memory for tpu_custom_call.1']
    #allocation5 [shape = 'u8[8192]{0}', space=vmem, size = 0x2000, scoped, tag = 'output window, operand 0, single buffered']
    %6 = vsyncpa [#allocation3], 0
    %7 = vsyncpa [#allocation4], 0
    // Predicated region
    $region2: #{tpu_custom_call.1} parent=1 // pred_check
      _
    $region3: #{tpu_custom_call.1} parent=1 // pred_check_branch
      %9 = sbr.rel (0) target = $region5
    $region4: #{tpu_custom_call.1} parent=1 // pred_region
      %11 = vsyncadd [#allocation3], 0
      %s12 = sshll.u32 %s0, 4
      %s13 = int_to_ptr.hbm [resolvable:$true] %s12
      %s14 = sshll.u32 [#allocation2], 4
      %s15 = int_to_ptr.vmem [resolvable:$true] %s14
      %20 = dma.hbm_to_vmem [thread:$0]  %s13, 256, %s15, [#allocation3], 128, 128, 8
    $region5: #{tpu_custom_call.1} parent=1 // pred_fallthru
      _
    // Predicated region
    $region6: #{tpu_custom_call.1} parent=1 // pred_check
      _
    $region7: #{tpu_custom_call.1} parent=1 // pred_check_branch
      %22 = sbr.rel (0) target = $region9
    $region8: #{tpu_custom_call.1} parent=1 // pred_region
      %24 = dma.done [#allocation3], 256
    $region9: #{tpu_custom_call.1} parent=1 // pred_fallthru
      _
    %v25 = vld [vmem:[#allocation2] sm:$0xff]
    %v26 = vld [vmem:[#allocation2 + $0x8] sm:$0xff]
    %29 = vst [vmem:[#allocation1] ss:$2 sm:$0xff] %v25
    %v30 = vld.sshfl [vmem:[#allocation1] sm:$0xff pattern:$0x75316420]
    %v31 = vld.sshfl [vmem:[#allocation1 + $0x8] sm:$0xff pattern:$0x75316420]
    %s32 = scalar_lea.vmem [#allocation1], 16
    %33 = vst [vmem:[%s32] ss:$2 sm:$0xff] %v26
    %v34 = vld.sshfl [vmem:[#allocation1 + $0x10] sm:$0xff pattern:$0x75316420]
    %v35 = vld.sshfl [vmem:[#allocation1 + $0x18] sm:$0xff pattern:$0x75316420]
    %vm40 = vcmask 1043456
    %v41 = vsel %vm40, %v30, 0.0
    %v42 = vsel %vm40, %v31, 0.0
    %v43 = vadd.f32 %v41, %v42
    %v44 = vsel %vm40, %v34, 0.0
    %v45 = vadd.f32 %v43, %v44
    %v46 = vsel %vm40, %v35, 0.0
    %v47 = vadd.f32 %v45, %v46
    %48 = vadd.xlane.f32.xlu0 %v47
    %v49 = vpop.xlane.xlu0 %48
    %v50 = vmul.f32 %v25, %v25
    %v51 = vmul.f32 %v26, %v26
    %54 = vst [vmem:[#allocation1] ss:$2 sm:$0xff] %v50
    %v55 = vld.sshfl [vmem:[#allocation1] sm:$0xff pattern:$0x75316420]
    %v56 = vld.sshfl [vmem:[#allocation1 + $0x8] sm:$0xff pattern:$0x75316420]
    %s57 = scalar_lea.vmem [#allocation1], 16
    %58 = vst [vmem:[%s57] ss:$2 sm:$0xff] %v51
    %v59 = vld.sshfl [vmem:[#allocation1 + $0x10] sm:$0xff pattern:$0x75316420]
    %v60 = vld.sshfl [vmem:[#allocation1 + $0x18] sm:$0xff pattern:$0x75316420]
    %v65 = vsel %vm40, %v55, 0.0
    %v66 = vsel %vm40, %v56, 0.0
    %v67 = vadd.f32 %v65, %v66
    %v68 = vsel %vm40, %v59, 0.0
    %v69 = vadd.f32 %v67, %v68
    %v70 = vsel %vm40, %v60, 0.0
    %v71 = vadd.f32 %v69, %v70
    %72 = vadd.xlane.f32.xlu0 %v71
    %v73 = vpop.xlane.xlu0 %72
    %v74 = vmul.f32 %v49, 0.001953125
    %v75 = vmul.f32 %v73, 0.001953125
    %v76 = vmul.f32 %v74, %v74
    %v77 = vsub.f32 %v75, %v76
    %v78 = vadd.f32 %v77, 1e-05
    %v79 = vrsqrt.pop %v78
    %v80 = vmul.f32 %v79, %v78
    %v81 = vmul.f32 %v80, %v79
    %v82 = vmul.f32 0.5, %v81
    %v83 = vsub.f32 1.5, %v82
    %v84 = vmul.f32 %v79, %v83
    %vm85 = vweird.f32 %v78
    %vm86 = vweird.f32 %v79
    %vm87 = vmor %vm85, %vm86
    %v88 = vsel %vm87, %v79, %v84
    %v91 = vunpack.c.l.s4 839922192
    %v92 = vunpack.c.0.s8 %v91
    %v93 = vperm.slane %v88, %v92
    %v95 = vmul.f32 %v25, %v93
    %v96 = vmul.f32 %v26, %v93
    %v97 = vmul.f32 %v74, %v88
    %v100 = vunpack.c.l.s4 839922192
    %v101 = vunpack.c.0.s8 %v100
    %v102 = vperm.slane %v97, %v101
    %v104 = vsub.f32 %v95, %v102
    %v105 = vsub.f32 %v96, %v102
    %106 = vst [vmem:[#allocation5] sm:$0xff] %v104
    %107 = vst [vmem:[#allocation5 + $0x8] sm:$0xff] %v105
    // Predicated region
    $region10: #{tpu_custom_call.1} parent=1 // pred_check
      _
    $region11: #{tpu_custom_call.1} parent=1 // pred_check_branch
      %109 = sbr.rel (0) target = $region13
    $region12: #{tpu_custom_call.1} parent=1 // pred_region
      %111 = vsyncadd [#allocation4], 0
      %s112 = sshll.u32 [#allocation5], 4
      %s113 = int_to_ptr.vmem [resolvable:$true] %s112
      %s114 = sshll.u32 %s1, 4
      %s115 = int_to_ptr.hbm [resolvable:$true] %s114
      %120 = dma.vmem_to_hbm [thread:$0]  %s113, 256, %s115, [#allocation4], 128, 128, 8
    $region13: #{tpu_custom_call.1} parent=1 // pred_fallthru
      _
    // Predicated region
    $region14: #{tpu_custom_call.1} parent=1 // pred_check
      _
    $region15: #{tpu_custom_call.1} parent=1 // pred_check_branch
      %122 = sbr.rel (0) target = $region17
    $region16: #{tpu_custom_call.1} parent=1 // pred_region
      %124 = dma.done [#allocation4], 256
    $region17: #{tpu_custom_call.1} parent=1 // pred_fallthru
      _
    %125 = vsyncpa [#allocation3], 1
    %126 = vsyncpa [#allocation4], 1

</llo_original>
